<compile_context>
chip_gen: v5e
topology: v5e:2x2
jax: 0.10.0
libtpu: 0.0.40
codegen_flags: <defaults>
</compile_context>

<pallas_src>
import jax
import jax.numpy as jnp
import numpy as np
from jax import lax
from jax.experimental import pallas as pl
from jax.experimental.pallas import tpu as pltpu


# ----------------------------------------------------------------------------
# Pallas kernel: LSTM recurrence, Tc timesteps per grid invocation.
# ----------------------------------------------------------------------------
def _make_lstm_kernel(T, Tc, H, n_t):
    tail_len = T - (n_t - 1) * Tc        # static length of the last chunk
    full_unroll = True if Tc <= 16 else 8

    def kernel(xp_ref, whh_ref, out_ref, h_ref, c_ref):
        # grid = (batch_chunks, time_chunks); time is the serial axis.
        s = pl.program_id(1)

        # h/c are outputs with a batch-only index_map -> resident across time.
        @pl.when(s == 0)
        def _():
            h_ref[...] = jnp.zeros_like(h_ref)
            c_ref[...] = jnp.zeros_like(c_ref)

        # (H, 4H) fused recurrent weights in bf16, loaded once per chunk.
        # TODO(synk): at production H, keep W_hh weight-stationary in the MXU
        # across timesteps via pltpu.matmul_push_rhs / matmul_acc_lhs.
        whh = whh_ref[...]

        def step(t, carry):
            h, c = carry
            # Single-pass bf16 MXU matmul (f32 accumulate) on the serial
            # h->h chain; x-projection + bias already folded into xp_ref.
            gates = xp_ref[t] + jnp.dot(
                h.astype(jnp.bfloat16), whh,
                preferred_element_type=jnp.float32)
            # Two full-vreg EUP pushes (sigmoid+tanh of the whole 4H lanes),
            # then slice; PyTorch gate order i, f, g, o.
            sig = jax.nn.sigmoid(gates)
            tnh = jnp.tanh(gates)
            i_g = sig[:, 0 * H:1 * H]
            f_g = sig[:, 1 * H:2 * H]
            g_g = tnh[:, 2 * H:3 * H]
            o_g = sig[:, 3 * H:4 * H]
            c_new = f_g * c + i_g * g_g
            h_new = o_g * jnp.tanh(c_new)
            # TODO(synk): once B*H >= 128, stage h outputs lane-dense
            # ((Tc, B*H) slab) to avoid masked vst.msk partial stores.
            out_ref[t] = h_new          # VMEM store; HBM writeback per chunk
            return h_new, c_new

        carry0 = (h_ref[...], c_ref[...])

        if tail_len == Tc:
            # T divisible by Tc: every chunk is a static, unrolled loop.
            h, c = lax.fori_loop(0, Tc, step, carry0, unroll=full_unroll)
        else:
            # Full chunks keep the static unrolled path; only the last chunk
            # runs the (static-length) ragged tail.  Positions t >= tail_len
            # of the tail out block are never written; they fall outside the
            # array bounds so Pallas clips them from the HBM writeback.
            def run_full(carry):
                return lax.fori_loop(0, Tc, step, carry, unroll=full_unroll)

            def run_tail(carry):
                return lax.fori_loop(0, tail_len, step, carry, unroll=True)

            h, c = lax.cond(s == n_t - 1, run_tail, run_full, carry0)

        h_ref[...] = h
        c_ref[...] = c

    return kernel


def lstm_recurrence(xproj, whh_cat, *, time_chunk=128, batch_chunk=None):
    """xproj: (T, B, 4H) = x @ W_ih^T + (b_ih + b_hh);  whh_cat: (H, 4H) bf16."""
    T, B, G = xproj.shape
    H = G // 4
    Tc = min(T, time_chunk)

    if batch_chunk is None:
        # Give v7x's second TensorCore real work once the batch is big enough
        # to keep sublane-aligned chunks; no-op at small B and on v5e/v6e.
        batch_chunk = B // 2 if (B >= 16 and (B // 2) % 8 == 0) else B
    Bb = batch_chunk
    assert B % Bb == 0, "batch_chunk must divide B"
    assert Bb == B or Bb % 8 == 0, "batch chunks must be sublane-aligned"
    n_b = B // Bb
    n_t = pl.cdiv(T, Tc)

    grid_spec = pltpu.PrefetchScalarGridSpec(
        num_scalar_prefetch=0,
        grid=(n_b, n_t),
        in_specs=[
            pl.BlockSpec((Tc, Bb, G), lambda b, s: (s, b, 0)),  # xproj chunk
            # bf16 resident recurrent weights (constant index_map).
            # TODO(synk): at production H, add pipeline_mode=pl.Buffered(1)
            # (or a one-time DMA into VMEM scratch) to drop its double buffer.
            pl.BlockSpec((H, G), lambda b, s: (0, 0)),
        ],
        out_specs=[
            pl.BlockSpec((Tc, Bb, H), lambda b, s: (s, b, 0)),  # allOut chunk
            pl.BlockSpec((Bb, H), lambda b, s: (b, 0)),         # h state / h_n
            pl.BlockSpec((Bb, H), lambda b, s: (b, 0)),         # c state / c_n
        ],
    )

    out_shapes = (
        jax.ShapeDtypeStruct((T, B, H), jnp.float32),  # all hidden states
        jax.ShapeDtypeStruct((B, H), jnp.float32),     # h_n
        jax.ShapeDtypeStruct((B, H), jnp.float32),     # c_n
    )

    return pl.pallas_call(
        _make_lstm_kernel(T, Tc, H, n_t),
        out_shape=out_shapes,
        grid_spec=grid_spec,
        compiler_params=pltpu.CompilerParams(
            # batch axis shards across TensorCores (v7x); time is serial.
            dimension_semantics=("parallel", "arbitrary"),
            # 32 MiB scoped VMEM: >= the v6e/v7x default, gives v5e (16 MiB
            # default) headroom for large Tc, and stays under v7x's 64 MiB
            # physical VMEM.
            vmem_limit_bytes=32 * 1024 * 1024),
    )(xproj, whh_cat)


# ----------------------------------------------------------------------------
# Encoder: parameter init + forward wrapper.
# ----------------------------------------------------------------------------
def init_encoder_params(key, hid_dim, embed_dim, vocab_size):
    k_emb, k_wih, k_whh, k_bih, k_bhh = jax.random.split(key, 5)
    bound = 1.0 / np.sqrt(hid_dim)  # PyTorch LSTM init range
    return dict(
        emb=jax.random.normal(k_emb, (vocab_size, embed_dim), jnp.float32),
        w_ih=jax.random.uniform(k_wih, (4 * hid_dim, embed_dim), jnp.float32,
                                -bound, bound),
        w_hh=jax.random.uniform(k_whh, (4 * hid_dim, hid_dim), jnp.float32,
                                -bound, bound),
        b_ih=jax.random.uniform(k_bih, (4 * hid_dim,), jnp.float32,
                                -bound, bound),
        b_hh=jax.random.uniform(k_bhh, (4 * hid_dim,), jnp.float32,
                                -bound, bound),
    )


def encoder_forward(params, x, start=None):
    """x: (B, T) int32 token ids.  `start` is unused (matches the PyTorch forward)."""
    del start  # unused by the reference module's forward as well
    emb = params["emb"]

    # Fused gather + transpose: (T, B, E) time-major embeddings directly.
    embeds_tm = jnp.take(emb, x.T, axis=0)

    # Fused gate weights; W_ih^T / W_hh^T columns keep PyTorch's i,f,g,o order.
    wih_cat = params["w_ih"].T                              # (E, 4H)
    whh_cat = params["w_hh"].T.astype(jnp.bfloat16)         # (H, 4H) bf16 resident
    bias = (params["b_ih"] + params["b_hh"])[None, None, :]  # (1, 1, 4H)

    # Hoisted input projection: one large, pipeline-friendly matmul in XLA.
    xproj = jnp.einsum("tbe,eg->tbg", embeds_tm, wih_cat,
                       precision=lax.Precision.HIGH) + bias   # (T, B, 4H)

    allout_tm, h_n, c_n = lstm_recurrence(xproj, whh_cat)

    all_out = jnp.transpose(allout_tm, (1, 0, 2))    # (B, T, H), batch_first
    hid = (h_n[None], c_n[None])                     # each (1, B, H) like nn.LSTM
    return all_out, hid


# ----------------------------------------------------------------------------
# Pure-JAX reference (lax.scan, full f32 precision) for verification.
# ----------------------------------------------------------------------------
def encoder_ref(params, x):
    emb = params["emb"]
    H = params["w_hh"].shape[1]
    w_ih, w_hh = params["w_ih"], params["w_hh"]
    b = params["b_ih"] + params["b_hh"]
    B = x.shape[0]
    embeds = jnp.take(emb, x, axis=0)

    def step(carry, x_t):
        h, c = carry
        gates = (jnp.dot(x_t, w_ih.T, precision=lax.Precision.HIGHEST)
                 + jnp.dot(h, w_hh.T, precision=lax.Precision.HIGHEST) + b)
        i = jax.nn.sigmoid(gates[:, 0:H])
        f = jax.nn.sigmoid(gates[:, H:2 * H])
        g = jnp.tanh(gates[:, 2 * H:3 * H])
        o = jax.nn.sigmoid(gates[:, 3 * H:4 * H])
        c = f * c + i * g
        h = o * jnp.tanh(c)
        return (h, c), h

    h0 = jnp.zeros((B, H), jnp.float32)
    c0 = jnp.zeros((B, H), jnp.float32)
    (h_n, c_n), outs = lax.scan(step, (h0, c0),
                                jnp.transpose(embeds, (1, 0, 2)))
    return jnp.transpose(outs, (1, 0, 2)), (h_n[None], c_n[None])


if __name__ == "__main__":
    # Small shapes: batch=2, seq=8, embedDim=32, hidDim=32, vocabSize=50
    B, T, E, H, V = 2, 8, 32, 32, 50

    key = jax.random.PRNGKey(0)
    k_params, k_tokens = jax.random.split(key)
    params = init_encoder_params(k_params, hid_dim=H, embed_dim=E, vocab_size=V)
    x = jax.random.randint(k_tokens, (B, T), 0, V, dtype=jnp.int32)
    start = jnp.zeros((B,), jnp.int32)  # unused, mirrors the PyTorch signature

    all_out, (h_n, c_n) = encoder_forward(params, x, start)
    jax.block_until_ready((all_out, h_n, c_n))

    ref_out, (ref_h, ref_c) = encoder_ref(params, x)
    # Tolerance reflects the single-pass bf16 recurrent matmul (f32 accumulate)
    # inside the kernel vs. the f32-HIGHEST reference; estimated drift ~1e-3.
    np.testing.assert_allclose(np.asarray(all_out), np.asarray(ref_out),
                               rtol=1e-2, atol=1e-2)
    np.testing.assert_allclose(np.asarray(h_n), np.asarray(ref_h),
                               rtol=1e-2, atol=1e-2)
    np.testing.assert_allclose(np.asarray(c_n), np.asarray(ref_c),
                               rtol=1e-2, atol=1e-2)

    assert all_out.shape == (B, T, H)
    assert h_n.shape == (1, B, H) and c_n.shape == (1, B, H)
    print("KERNEL_OK")
</pallas_src>

<mosaic_0001>
module attributes {stable_mosaic.version = 11 : i64} {
  func.func @kernel(%arg0: i32, %arg1: i32, %arg2: memref<8x2x128xf32, #tpu.memory_space<vmem>>, %arg3: memref<32x128xbf16, #tpu.memory_space<vmem>>, %arg4: memref<8x2x32xf32, #tpu.memory_space<vmem>>, %arg5: memref<2x32xf32, #tpu.memory_space<vmem>>, %arg6: memref<2x32xf32, #tpu.memory_space<vmem>>) attributes {dimension_semantics = [#tpu.dimension_semantics<parallel>, #tpu.dimension_semantics<arbitrary>], iteration_bounds = array<i64: 1, 1>, scalar_prefetch = 0 : i64, scratch_operands = 0 : i64, tpu.core_type = #tpu.core_type<tc>, window_params = [{transform_indices = @transform_0, window_bounds = array<i64: 8, 2, 128>}, {pipeline_mode = #tpu.pipeline_mode<synchronous>, transform_indices = @transform_1, window_bounds = array<i64: 32, 128>}, {transform_indices = @transform_2, window_bounds = array<i64: 8, 2, 32>}, {transform_indices = @transform_3, window_bounds = array<i64: 2, 32>}, {transform_indices = @transform_4, window_bounds = array<i64: 2, 32>}]} {
    %c0_i32 = arith.constant 0 : i32
    %0 = arith.cmpi eq, %arg1, %c0_i32 : i32
    %1 = arith.extui %0 : i1 to i32
    %c0_i32_0 = arith.constant 0 : i32
    %2 = arith.cmpi ne, %1, %c0_i32_0 : i32
    scf.if %2 {
      %cst_58 = arith.constant 0.000000e+00 : f32
      %208 = vector.broadcast %cst_58 : f32 to vector<2x32xf32>
      %c0_59 = arith.constant 0 : index
      %c0_60 = arith.constant 0 : index
      %209 = vector.load %arg5[%c0_59, %c0_60] : memref<2x32xf32, #tpu.memory_space<vmem>>, vector<2x32xf32>
      tpu.vector_store %arg5[%c0_59, %c0_60], %208 {strides = array<i32>} : memref<2x32xf32, #tpu.memory_space<vmem>>, vector<2x32xf32>,
      %cst_61 = arith.constant 0.000000e+00 : f32
      %210 = vector.broadcast %cst_61 : f32 to vector<2x32xf32>
      %c0_62 = arith.constant 0 : index
      %c0_63 = arith.constant 0 : index
      %211 = vector.load %arg6[%c0_62, %c0_63] : memref<2x32xf32, #tpu.memory_space<vmem>>, vector<2x32xf32>
      tpu.vector_store %arg6[%c0_62, %c0_63], %210 {strides = array<i32>} : memref<2x32xf32, #tpu.memory_space<vmem>>, vector<2x32xf32>,
    } else {
    }
    %c0 = arith.constant 0 : index
    %c0_1 = arith.constant 0 : index
    %3 = vector.load %arg3[%c0, %c0_1] : memref<32x128xbf16, #tpu.memory_space<vmem>>, vector<32x128xbf16>
    %c0_2 = arith.constant 0 : index
    %c0_3 = arith.constant 0 : index
    %4 = vector.load %arg5[%c0_2, %c0_3] : memref<2x32xf32, #tpu.memory_space<vmem>>, vector<2x32xf32>
    %c0_4 = arith.constant 0 : index
    %c0_5 = arith.constant 0 : index
    %5 = vector.load %arg6[%c0_4, %c0_5] : memref<2x32xf32, #tpu.memory_space<vmem>>, vector<2x32xf32>
    %c0_i32_6 = arith.constant 0 : i32
    %6 = arith.index_cast %c0_i32_6 : i32 to index
    %c0_7 = arith.constant 0 : index
    %c0_8 = arith.constant 0 : index
    %7 = vector.load %arg2[%6, %c0_7, %c0_8] : memref<8x2x128xf32, #tpu.memory_space<vmem>>, vector<1x2x128xf32>
    %8 = vector.shape_cast %7 : vector<1x2x128xf32> to vector<2x128xf32>
    %9 = arith.truncf %4 : vector<2x32xf32> to vector<2x32xbf16>
    %cst = arith.constant dense<0.000000e+00> : vector<2x128xf32>
    %10 = tpu.matmul %9, %3, %cst {dimension_numbers = #tpu.dot_dimension_numbers<[1], [0], [0], [1], [0, 0, 1, 1], [], []>} : vector<2x32xbf16>, vector<32x128xbf16>, vector<2x128xf32> -> vector<2x128xf32>
    %11 = arith.addf %8, %10 : vector<2x128xf32>
    %12 = arith.negf %11 : vector<2x128xf32>
    %13 = math.exp %12 : vector<2x128xf32>
    %cst_9 = arith.constant 1.000000e+00 : f32
    %14 = vector.broadcast %cst_9 : f32 to vector<2x128xf32>
    %15 = arith.addf %14, %13 : vector<2x128xf32>
    %16 = arith.divf %14, %15 : vector<2x128xf32>
    %17 = math.tanh %11 : vector<2x128xf32>
    %18 = vector.extract_strided_slice %16 {offsets = [0, 0], sizes = [2, 32], strides = [1, 1]} : vector<2x128xf32> to vector<2x32xf32>
    %19 = vector.extract_strided_slice %16 {offsets = [0, 32], sizes = [2, 32], strides = [1, 1]} : vector<2x128xf32> to vector<2x32xf32>
    %20 = vector.extract_strided_slice %17 {offsets = [0, 64], sizes = [2, 32], strides = [1, 1]} : vector<2x128xf32> to vector<2x32xf32>
    %21 = vector.extract_strided_slice %16 {offsets = [0, 96], sizes = [2, 32], strides = [1, 1]} : vector<2x128xf32> to vector<2x32xf32>
    %22 = arith.mulf %19, %5 : vector<2x32xf32>
    %23 = arith.mulf %18, %20 : vector<2x32xf32>
    %24 = arith.addf %22, %23 : vector<2x32xf32>
    %25 = math.tanh %24 : vector<2x32xf32>
    %26 = arith.mulf %21, %25 : vector<2x32xf32>
    %27 = arith.index_cast %c0_i32_6 : i32 to index
    %c0_10 = arith.constant 0 : index
    %c0_11 = arith.constant 0 : index
    %28 = vector.load %arg4[%27, %c0_10, %c0_11] : memref<8x2x32xf32, #tpu.memory_space<vmem>>, vector<1x2x32xf32>
    %29 = vector.shape_cast %28 : vector<1x2x32xf32> to vector<2x32xf32>
    %30 = vector.shape_cast %26 : vector<2x32xf32> to vector<1x2x32xf32>
    tpu.vector_store %arg4[%27, %c0_10, %c0_11], %30 {strides = array<i32>} : memref<8x2x32xf32, #tpu.memory_space<vmem>>, vector<1x2x32xf32>,
    %c1_i32 = arith.constant 1 : i32
    %31 = arith.index_cast %c1_i32 : i32 to index
    %c0_12 = arith.constant 0 : index
    %c0_13 = arith.constant 0 : index
    %32 = vector.load %arg2[%31, %c0_12, %c0_13] : memref<8x2x128xf32, #tpu.memory_space<vmem>>, vector<1x2x128xf32>
    %33 = vector.shape_cast %32 : vector<1x2x128xf32> to vector<2x128xf32>
    %34 = arith.truncf %26 : vector<2x32xf32> to vector<2x32xbf16>
    %cst_14 = arith.constant dense<0.000000e+00> : vector<2x128xf32>
    %35 = tpu.matmul %34, %3, %cst_14 {dimension_numbers = #tpu.dot_dimension_numbers<[1], [0], [0], [1], [0, 0, 1, 1], [], []>} : vector<2x32xbf16>, vector<32x128xbf16>, vector<2x128xf32> -> vector<2x128xf32>
    %36 = arith.addf %33, %35 : vector<2x128xf32>
    %37 = arith.negf %36 : vector<2x128xf32>
    %38 = math.exp %37 : vector<2x128xf32>
    %cst_15 = arith.constant 1.000000e+00 : f32
    %39 = vector.broadcast %cst_15 : f32 to vector<2x128xf32>
    %40 = arith.addf %39, %38 : vector<2x128xf32>
    %41 = arith.divf %39, %40 : vector<2x128xf32>
    %42 = math.tanh %36 : vector<2x128xf32>
    %43 = vector.extract_strided_slice %41 {offsets = [0, 0], sizes = [2, 32], strides = [1, 1]} : vector<2x128xf32> to vector<2x32xf32>
    %44 = vector.extract_strided_slice %41 {offsets = [0, 32], sizes = [2, 32], strides = [1, 1]} : vector<2x128xf32> to vector<2x32xf32>
    %45 = vector.extract_strided_slice %42 {offsets = [0, 64], sizes = [2, 32], strides = [1, 1]} : vector<2x128xf32> to vector<2x32xf32>
    %46 = vector.extract_strided_slice %41 {offsets = [0, 96], sizes = [2, 32], strides = [1, 1]} : vector<2x128xf32> to vector<2x32xf32>
    %47 = arith.mulf %44, %24 : vector<2x32xf32>
    %48 = arith.mulf %43, %45 : vector<2x32xf32>
    %49 = arith.addf %47, %48 : vector<2x32xf32>
    %50 = math.tanh %49 : vector<2x32xf32>
    %51 = arith.mulf %46, %50 : vector<2x32xf32>
    %52 = arith.index_cast %c1_i32 : i32 to index
    %c0_16 = arith.constant 0 : index
    %c0_17 = arith.constant 0 : index
    %53 = vector.load %arg4[%52, %c0_16, %c0_17] : memref<8x2x32xf32, #tpu.memory_space<vmem>>, vector<1x2x32xf32>
    %54 = vector.shape_cast %53 : vector<1x2x32xf32> to vector<2x32xf32>
    %55 = vector.shape_cast %51 : vector<2x32xf32> to vector<1x2x32xf32>
    tpu.vector_store %arg4[%52, %c0_16, %c0_17], %55 {strides = array<i32>} : memref<8x2x32xf32, #tpu.memory_space<vmem>>, vector<1x2x32xf32>,
    %c2_i32 = arith.constant 2 : i32
    %56 = arith.index_cast %c2_i32 : i32 to index
    %c0_18 = arith.constant 0 : index
    %c0_19 = arith.constant 0 : index
    %57 = vector.load %arg2[%56, %c0_18, %c0_19] : memref<8x2x128xf32, #tpu.memory_space<vmem>>, vector<1x2x128xf32>
    %58 = vector.shape_cast %57 : vector<1x2x128xf32> to vector<2x128xf32>
    %59 = arith.truncf %51 : vector<2x32xf32> to vector<2x32xbf16>
    %cst_20 = arith.constant dense<0.000000e+00> : vector<2x128xf32>
    %60 = tpu.matmul %59, %3, %cst_20 {dimension_numbers = #tpu.dot_dimension_numbers<[1], [0], [0], [1], [0, 0, 1, 1], [], []>} : vector<2x32xbf16>, vector<32x128xbf16>, vector<2x128xf32> -> vector<2x128xf32>
    %61 = arith.addf %58, %60 : vector<2x128xf32>
    %62 = arith.negf %61 : vector<2x128xf32>
    %63 = math.exp %62 : vector<2x128xf32>
    %cst_21 = arith.constant 1.000000e+00 : f32
    %64 = vector.broadcast %cst_21 : f32 to vector<2x128xf32>
    %65 = arith.addf %64, %63 : vector<2x128xf32>
    %66 = arith.divf %64, %65 : vector<2x128xf32>
    %67 = math.tanh %61 : vector<2x128xf32>
    %68 = vector.extract_strided_slice %66 {offsets = [0, 0], sizes = [2, 32], strides = [1, 1]} : vector<2x128xf32> to vector<2x32xf32>
    %69 = vector.extract_strided_slice %66 {offsets = [0, 32], sizes = [2, 32], strides = [1, 1]} : vector<2x128xf32> to vector<2x32xf32>
    %70 = vector.extract_strided_slice %67 {offsets = [0, 64], sizes = [2, 32], strides = [1, 1]} : vector<2x128xf32> to vector<2x32xf32>
    %71 = vector.extract_strided_slice %66 {offsets = [0, 96], sizes = [2, 32], strides = [1, 1]} : vector<2x128xf32> to vector<2x32xf32>
    %72 = arith.mulf %69, %49 : vector<2x32xf32>
    %73 = arith.mulf %68, %70 : vector<2x32xf32>
    %74 = arith.addf %72, %73 : vector<2x32xf32>
    %75 = math.tanh %74 : vector<2x32xf32>
    %76 = arith.mulf %71, %75 : vector<2x32xf32>
    %77 = arith.index_cast %c2_i32 : i32 to index
    %c0_22 = arith.constant 0 : index
    %c0_23 = arith.constant 0 : index
    %78 = vector.load %arg4[%77, %c0_22, %c0_23] : memref<8x2x32xf32, #tpu.memory_space<vmem>>, vector<1x2x32xf32>
    %79 = vector.shape_cast %78 : vector<1x2x32xf32> to vector<2x32xf32>
    %80 = vector.shape_cast %76 : vector<2x32xf32> to vector<1x2x32xf32>
    tpu.vector_store %arg4[%77, %c0_22, %c0_23], %80 {strides = array<i32>} : memref<8x2x32xf32, #tpu.memory_space<vmem>>, vector<1x2x32xf32>,
    %c3_i32 = arith.constant 3 : i32
    %81 = arith.index_cast %c3_i32 : i32 to index
    %c0_24 = arith.constant 0 : index
    %c0_25 = arith.constant 0 : index
    %82 = vector.load %arg2[%81, %c0_24, %c0_25] : memref<8x2x128xf32, #tpu.memory_space<vmem>>, vector<1x2x128xf32>
    %83 = vector.shape_cast %82 : vector<1x2x128xf32> to vector<2x128xf32>
    %84 = arith.truncf %76 : vector<2x32xf32> to vector<2x32xbf16>
    %cst_26 = arith.constant dense<0.000000e+00> : vector<2x128xf32>
    %85 = tpu.matmul %84, %3, %cst_26 {dimension_numbers = #tpu.dot_dimension_numbers<[1], [0], [0], [1], [0, 0, 1, 1], [], []>} : vector<2x32xbf16>, vector<32x128xbf16>, vector<2x128xf32> -> vector<2x128xf32>
    %86 = arith.addf %83, %85 : vector<2x128xf32>
    %87 = arith.negf %86 : vector<2x128xf32>
    %88 = math.exp %87 : vector<2x128xf32>
    %cst_27 = arith.constant 1.000000e+00 : f32
    %89 = vector.broadcast %cst_27 : f32 to vector<2x128xf32>
    %90 = arith.addf %89, %88 : vector<2x128xf32>
    %91 = arith.divf %89, %90 : vector<2x128xf32>
    %92 = math.tanh %86 : vector<2x128xf32>
    %93 = vector.extract_strided_slice %91 {offsets = [0, 0], sizes = [2, 32], strides = [1, 1]} : vector<2x128xf32> to vector<2x32xf32>
    %94 = vector.extract_strided_slice %91 {offsets = [0, 32], sizes = [2, 32], strides = [1, 1]} : vector<2x128xf32> to vector<2x32xf32>
    %95 = vector.extract_strided_slice %92 {offsets = [0, 64], sizes = [2, 32], strides = [1, 1]} : vector<2x128xf32> to vector<2x32xf32>
    %96 = vector.extract_strided_slice %91 {offsets = [0, 96], sizes = [2, 32], strides = [1, 1]} : vector<2x128xf32> to vector<2x32xf32>
    %97 = arith.mulf %94, %74 : vector<2x32xf32>
    %98 = arith.mulf %93, %95 : vector<2x32xf32>
    %99 = arith.addf %97, %98 : vector<2x32xf32>
    %100 = math.tanh %99 : vector<2x32xf32>
    %101 = arith.mulf %96, %100 : vector<2x32xf32>
    %102 = arith.index_cast %c3_i32 : i32 to index
    %c0_28 = arith.constant 0 : index
    %c0_29 = arith.constant 0 : index
    %103 = vector.load %arg4[%102, %c0_28, %c0_29] : memref<8x2x32xf32, #tpu.memory_space<vmem>>, vector<1x2x32xf32>
    %104 = vector.shape_cast %103 : vector<1x2x32xf32> to vector<2x32xf32>
    %105 = vector.shape_cast %101 : vector<2x32xf32> to vector<1x2x32xf32>
    tpu.vector_store %arg4[%102, %c0_28, %c0_29], %105 {strides = array<i32>} : memref<8x2x32xf32, #tpu.memory_space<vmem>>, vector<1x2x32xf32>,
    %c4_i32 = arith.constant 4 : i32
    %106 = arith.index_cast %c4_i32 : i32 to index
    %c0_30 = arith.constant 0 : index
    %c0_31 = arith.constant 0 : index
    %107 = vector.load %arg2[%106, %c0_30, %c0_31] : memref<8x2x128xf32, #tpu.memory_space<vmem>>, vector<1x2x128xf32>
    %108 = vector.shape_cast %107 : vector<1x2x128xf32> to vector<2x128xf32>
    %109 = arith.truncf %101 : vector<2x32xf32> to vector<2x32xbf16>
    %cst_32 = arith.constant dense<0.000000e+00> : vector<2x128xf32>
    %110 = tpu.matmul %109, %3, %cst_32 {dimension_numbers = #tpu.dot_dimension_numbers<[1], [0], [0], [1], [0, 0, 1, 1], [], []>} : vector<2x32xbf16>, vector<32x128xbf16>, vector<2x128xf32> -> vector<2x128xf32>
    %111 = arith.addf %108, %110 : vector<2x128xf32>
    %112 = arith.negf %111 : vector<2x128xf32>
    %113 = math.exp %112 : vector<2x128xf32>
    %cst_33 = arith.constant 1.000000e+00 : f32
    %114 = vector.broadcast %cst_33 : f32 to vector<2x128xf32>
    %115 = arith.addf %114, %113 : vector<2x128xf32>
    %116 = arith.divf %114, %115 : vector<2x128xf32>
    %117 = math.tanh %111 : vector<2x128xf32>
    %118 = vector.extract_strided_slice %116 {offsets = [0, 0], sizes = [2, 32], strides = [1, 1]} : vector<2x128xf32> to vector<2x32xf32>
    %119 = vector.extract_strided_slice %116 {offsets = [0, 32], sizes = [2, 32], strides = [1, 1]} : vector<2x128xf32> to vector<2x32xf32>
    %120 = vector.extract_strided_slice %117 {offsets = [0, 64], sizes = [2, 32], strides = [1, 1]} : vector<2x128xf32> to vector<2x32xf32>
    %121 = vector.extract_strided_slice %116 {offsets = [0, 96], sizes = [2, 32], strides = [1, 1]} : vector<2x128xf32> to vector<2x32xf32>
    %122 = arith.mulf %119, %99 : vector<2x32xf32>
    %123 = arith.mulf %118, %120 : vector<2x32xf32>
    %124 = arith.addf %122, %123 : vector<2x32xf32>
    %125 = math.tanh %124 : vector<2x32xf32>
    %126 = arith.mulf %121, %125 : vector<2x32xf32>
    %127 = arith.index_cast %c4_i32 : i32 to index
    %c0_34 = arith.constant 0 : index
    %c0_35 = arith.constant 0 : index
    %128 = vector.load %arg4[%127, %c0_34, %c0_35] : memref<8x2x32xf32, #tpu.memory_space<vmem>>, vector<1x2x32xf32>
    %129 = vector.shape_cast %128 : vector<1x2x32xf32> to vector<2x32xf32>
    %130 = vector.shape_cast %126 : vector<2x32xf32> to vector<1x2x32xf32>
    tpu.vector_store %arg4[%127, %c0_34, %c0_35], %130 {strides = array<i32>} : memref<8x2x32xf32, #tpu.memory_space<vmem>>, vector<1x2x32xf32>,
    %c5_i32 = arith.constant 5 : i32
    %131 = arith.index_cast %c5_i32 : i32 to index
    %c0_36 = arith.constant 0 : index
    %c0_37 = arith.constant 0 : index
    %132 = vector.load %arg2[%131, %c0_36, %c0_37] : memref<8x2x128xf32, #tpu.memory_space<vmem>>, vector<1x2x128xf32>
    %133 = vector.shape_cast %132 : vector<1x2x128xf32> to vector<2x128xf32>
    %134 = arith.truncf %126 : vector<2x32xf32> to vector<2x32xbf16>
    %cst_38 = arith.constant dense<0.000000e+00> : vector<2x128xf32>
    %135 = tpu.matmul %134, %3, %cst_38 {dimension_numbers = #tpu.dot_dimension_numbers<[1], [0], [0], [1], [0, 0, 1, 1], [], []>} : vector<2x32xbf16>, vector<32x128xbf16>, vector<2x128xf32> -> vector<2x128xf32>
    %136 = arith.addf %133, %135 : vector<2x128xf32>
    %137 = arith.negf %136 : vector<2x128xf32>
    %138 = math.exp %137 : vector<2x128xf32>
    %cst_39 = arith.constant 1.000000e+00 : f32
    %139 = vector.broadcast %cst_39 : f32 to vector<2x128xf32>
    %140 = arith.addf %139, %138 : vector<2x128xf32>
    %141 = arith.divf %139, %140 : vector<2x128xf32>
    %142 = math.tanh %136 : vector<2x128xf32>
    %143 = vector.extract_strided_slice %141 {offsets = [0, 0], sizes = [2, 32], strides = [1, 1]} : vector<2x128xf32> to vector<2x32xf32>
    %144 = vector.extract_strided_slice %141 {offsets = [0, 32], sizes = [2, 32], strides = [1, 1]} : vector<2x128xf32> to vector<2x32xf32>
    %145 = vector.extract_strided_slice %142 {offsets = [0, 64], sizes = [2, 32], strides = [1, 1]} : vector<2x128xf32> to vector<2x32xf32>
    %146 = vector.extract_strided_slice %141 {offsets = [0, 96], sizes = [2, 32], strides = [1, 1]} : vector<2x128xf32> to vector<2x32xf32>
    %147 = arith.mulf %144, %124 : vector<2x32xf32>
    %148 = arith.mulf %143, %145 : vector<2x32xf32>
    %149 = arith.addf %147, %148 : vector<2x32xf32>
    %150 = math.tanh %149 : vector<2x32xf32>
    %151 = arith.mulf %146, %150 : vector<2x32xf32>
    %152 = arith.index_cast %c5_i32 : i32 to index
    %c0_40 = arith.constant 0 : index
    %c0_41 = arith.constant 0 : index
    %153 = vector.load %arg4[%152, %c0_40, %c0_41] : memref<8x2x32xf32, #tpu.memory_space<vmem>>, vector<1x2x32xf32>
    %154 = vector.shape_cast %153 : vector<1x2x32xf32> to vector<2x32xf32>
    %155 = vector.shape_cast %151 : vector<2x32xf32> to vector<1x2x32xf32>
    tpu.vector_store %arg4[%152, %c0_40, %c0_41], %155 {strides = array<i32>} : memref<8x2x32xf32, #tpu.memory_space<vmem>>, vector<1x2x32xf32>,
    %c6_i32 = arith.constant 6 : i32
    %156 = arith.index_cast %c6_i32 : i32 to index
    %c0_42 = arith.constant 0 : index
    %c0_43 = arith.constant 0 : index
    %157 = vector.load %arg2[%156, %c0_42, %c0_43] : memref<8x2x128xf32, #tpu.memory_space<vmem>>, vector<1x2x128xf32>
    %158 = vector.shape_cast %157 : vector<1x2x128xf32> to vector<2x128xf32>
    %159 = arith.truncf %151 : vector<2x32xf32> to vector<2x32xbf16>
    %cst_44 = arith.constant dense<0.000000e+00> : vector<2x128xf32>
    %160 = tpu.matmul %159, %3, %cst_44 {dimension_numbers = #tpu.dot_dimension_numbers<[1], [0], [0], [1], [0, 0, 1, 1], [], []>} : vector<2x32xbf16>, vector<32x128xbf16>, vector<2x128xf32> -> vector<2x128xf32>
    %161 = arith.addf %158, %160 : vector<2x128xf32>
    %162 = arith.negf %161 : vector<2x128xf32>
    %163 = math.exp %162 : vector<2x128xf32>
    %cst_45 = arith.constant 1.000000e+00 : f32
    %164 = vector.broadcast %cst_45 : f32 to vector<2x128xf32>
    %165 = arith.addf %164, %163 : vector<2x128xf32>
    %166 = arith.divf %164, %165 : vector<2x128xf32>
    %167 = math.tanh %161 : vector<2x128xf32>
    %168 = vector.extract_strided_slice %166 {offsets = [0, 0], sizes = [2, 32], strides = [1, 1]} : vector<2x128xf32> to vector<2x32xf32>
    %169 = vector.extract_strided_slice %166 {offsets = [0, 32], sizes = [2, 32], strides = [1, 1]} : vector<2x128xf32> to vector<2x32xf32>
    %170 = vector.extract_strided_slice %167 {offsets = [0, 64], sizes = [2, 32], strides = [1, 1]} : vector<2x128xf32> to vector<2x32xf32>
    %171 = vector.extract_strided_slice %166 {offsets = [0, 96], sizes = [2, 32], strides = [1, 1]} : vector<2x128xf32> to vector<2x32xf32>
    %172 = arith.mulf %169, %149 : vector<2x32xf32>
    %173 = arith.mulf %168, %170 : vector<2x32xf32>
    %174 = arith.addf %172, %173 : vector<2x32xf32>
    %175 = math.tanh %174 : vector<2x32xf32>
    %176 = arith.mulf %171, %175 : vector<2x32xf32>
    %177 = arith.index_cast %c6_i32 : i32 to index
    %c0_46 = arith.constant 0 : index
    %c0_47 = arith.constant 0 : index
    %178 = vector.load %arg4[%177, %c0_46, %c0_47] : memref<8x2x32xf32, #tpu.memory_space<vmem>>, vector<1x2x32xf32>
    %179 = vector.shape_cast %178 : vector<1x2x32xf32> to vector<2x32xf32>
    %180 = vector.shape_cast %176 : vector<2x32xf32> to vector<1x2x32xf32>
    tpu.vector_store %arg4[%177, %c0_46, %c0_47], %180 {strides = array<i32>} : memref<8x2x32xf32, #tpu.memory_space<vmem>>, vector<1x2x32xf32>,
    %c7_i32 = arith.constant 7 : i32
    %181 = arith.index_cast %c7_i32 : i32 to index
    %c0_48 = arith.constant 0 : index
    %c0_49 = arith.constant 0 : index
    %182 = vector.load %arg2[%181, %c0_48, %c0_49] : memref<8x2x128xf32, #tpu.memory_space<vmem>>, vector<1x2x128xf32>
    %183 = vector.shape_cast %182 : vector<1x2x128xf32> to vector<2x128xf32>
    %184 = arith.truncf %176 : vector<2x32xf32> to vector<2x32xbf16>
    %cst_50 = arith.constant dense<0.000000e+00> : vector<2x128xf32>
    %185 = tpu.matmul %184, %3, %cst_50 {dimension_numbers = #tpu.dot_dimension_numbers<[1], [0], [0], [1], [0, 0, 1, 1], [], []>} : vector<2x32xbf16>, vector<32x128xbf16>, vector<2x128xf32> -> vector<2x128xf32>
    %186 = arith.addf %183, %185 : vector<2x128xf32>
    %187 = arith.negf %186 : vector<2x128xf32>
    %188 = math.exp %187 : vector<2x128xf32>
    %cst_51 = arith.constant 1.000000e+00 : f32
    %189 = vector.broadcast %cst_51 : f32 to vector<2x128xf32>
    %190 = arith.addf %189, %188 : vector<2x128xf32>
    %191 = arith.divf %189, %190 : vector<2x128xf32>
    %192 = math.tanh %186 : vector<2x128xf32>
    %193 = vector.extract_strided_slice %191 {offsets = [0, 0], sizes = [2, 32], strides = [1, 1]} : vector<2x128xf32> to vector<2x32xf32>
    %194 = vector.extract_strided_slice %191 {offsets = [0, 32], sizes = [2, 32], strides = [1, 1]} : vector<2x128xf32> to vector<2x32xf32>
    %195 = vector.extract_strided_slice %192 {offsets = [0, 64], sizes = [2, 32], strides = [1, 1]} : vector<2x128xf32> to vector<2x32xf32>
    %196 = vector.extract_strided_slice %191 {offsets = [0, 96], sizes = [2, 32], strides = [1, 1]} : vector<2x128xf32> to vector<2x32xf32>
    %197 = arith.mulf %194, %174 : vector<2x32xf32>
    %198 = arith.mulf %193, %195 : vector<2x32xf32>
    %199 = arith.addf %197, %198 : vector<2x32xf32>
    %200 = math.tanh %199 : vector<2x32xf32>
    %201 = arith.mulf %196, %200 : vector<2x32xf32>
    %202 = arith.index_cast %c7_i32 : i32 to index
    %c0_52 = arith.constant 0 : index
    %c0_53 = arith.constant 0 : index
    %203 = vector.load %arg4[%202, %c0_52, %c0_53] : memref<8x2x32xf32, #tpu.memory_space<vmem>>, vector<1x2x32xf32>
    %204 = vector.shape_cast %203 : vector<1x2x32xf32> to vector<2x32xf32>
    %205 = vector.shape_cast %201 : vector<2x32xf32> to vector<1x2x32xf32>
    tpu.vector_store %arg4[%202, %c0_52, %c0_53], %205 {strides = array<i32>} : memref<8x2x32xf32, #tpu.memory_space<vmem>>, vector<1x2x32xf32>,
    %c8_i32 = arith.constant 8 : i32
    %c0_54 = arith.constant 0 : index
    %c0_55 = arith.constant 0 : index
    %206 = vector.load %arg5[%c0_54, %c0_55] : memref<2x32xf32, #tpu.memory_space<vmem>>, vector<2x32xf32>
    tpu.vector_store %arg5[%c0_54, %c0_55], %201 {strides = array<i32>} : memref<2x32xf32, #tpu.memory_space<vmem>>, vector<2x32xf32>,
    %c0_56 = arith.constant 0 : index
    %c0_57 = arith.constant 0 : index
    %207 = vector.load %arg6[%c0_56, %c0_57] : memref<2x32xf32, #tpu.memory_space<vmem>>, vector<2x32xf32>
    tpu.vector_store %arg6[%c0_56, %c0_57], %199 {strides = array<i32>} : memref<2x32xf32, #tpu.memory_space<vmem>>, vector<2x32xf32>,
    return
  }
  func.func @transform_0(%arg0: i32, %arg1: i32) -> (i32, i32, i32) {
    %c0_i32 = arith.constant 0 : i32
    %c0_i32_0 = arith.constant 0 : i32
    return %arg1, %arg0, %c0_i32 : i32, i32, i32
  }
  func.func @transform_1(%arg0: i32, %arg1: i32) -> (i32, i32) {
    %c0_i32 = arith.constant 0 : i32
    %c0_i32_0 = arith.constant 0 : i32
    %c0_i32_1 = arith.constant 0 : i32
    return %c0_i32, %c0_i32_0 : i32, i32
  }
  func.func @transform_2(%arg0: i32, %arg1: i32) -> (i32, i32, i32) {
    %c0_i32 = arith.constant 0 : i32
    %c0_i32_0 = arith.constant 0 : i32
    return %arg1, %arg0, %c0_i32 : i32, i32, i32
  }
  func.func @transform_3(%arg0: i32, %arg1: i32) -> (i32, i32) {
    %c0_i32 = arith.constant 0 : i32
    %c0_i32_0 = arith.constant 0 : i32
    return %arg0, %c0_i32 : i32, i32
  }
  func.func @transform_4(%arg0: i32, %arg1: i32) -> (i32, i32) {
    %c0_i32 = arith.constant 0 : i32
    %c0_i32_0 = arith.constant 0 : i32
    return %arg0, %c0_i32 : i32, i32
  }
}

</mosaic_0001>

<llo_original>
// kernel: tpu_custom_call.1
$region0: #{tpu_custom_call.1}
  #allocation0 [shape = 'u32[]', space=smem, size = 0x4, offset = 0x4, fixed_abs, tag = 'smem constant byte address 0x4 - core index']
  #allocation1 [shape = 'u32[72,128]{1,0:T(1,128)}', space=vmem, size = 0x9000, scoped, tag = 'internal scratch']
  %s0 = inlined_call_operand.hbm [shape: f32[8,2,128], index: 0, kind: input, shape index: {}]
  %s1 = inlined_call_operand.hbm [shape: bf16[32,128], index: 1, kind: input, shape index: {}]
  %s2 = inlined_call_operand.hbm [shape: f32[8,2,32], index: 2, kind: output, shape index: {0}]
  %s3 = inlined_call_operand.hbm [shape: f32[2,32], index: 3, kind: output, shape index: {1}]
  %s4 = inlined_call_operand.hbm [shape: f32[2,32], index: 4, kind: output, shape index: {2}]
  %5 = xla_tuple %s2, %s3, %s4
  %s6 = sld [smem:[#allocation0]]
  $region46: #{tpu_custom_call.1} parent=0
    _
  %s8 = ssub.s32 1, %s6
  %s9 = scalar_select 0, %s8, %s6
  $region1: #{tpu_custom_call.1} parent=0
    #allocation2 [shape = 'u8[8192]{0}', space=vmem, size = 0x2000, scoped, tag = 'input window, operand 0, single buffered']
    #allocation3 [shape = 's32[1]{0}', space=sflag, size = 0x4, scoped, tag = 'scoped memory for tpu_custom_call.1']
    #allocation4 [shape = 's32[1]{0}', space=sflag, size = 0x4, scoped, tag = 'scoped memory for tpu_custom_call.1']
    #allocation5 [shape = 'u8[8192]{0}', space=vmem, size = 0x2000, scoped, tag = 'input window, operand 1, single buffered']
    #allocation6 [shape = 's32[1]{0}', space=sflag, size = 0x4, scoped, tag = 'scoped memory for tpu_custom_call.1']
    #allocation7 [shape = 'u8[8192]{0}', space=vmem, size = 0x2000, scoped, tag = 'output window, operand 0, single buffered']
    #allocation8 [shape = 'u8[1024]{0}', space=vmem, size = 0x400, scoped, tag = 'output window, operand 1, single buffered']
    #allocation9 [shape = 's32[1]{0}', space=sflag, size = 0x4, scoped, tag = 'scoped memory for tpu_custom_call.1']
    #allocation10 [shape = 'u8[1024]{0}', space=vmem, size = 0x400, scoped, tag = 'output window, operand 2, single buffered']
    %10 = vsyncpa [#allocation3], 0
    %11 = vsyncpa [#allocation6], 0
    %12 = vsyncpa [#allocation4], 0
    %13 = vsyncpa [#allocation9], 0
    // Predicated region
    $region2: #{tpu_custom_call.1} parent=1 // pred_check
      _
    $region3: #{tpu_custom_call.1} parent=1 // pred_check_branch
      %15 = sbr.rel (0) target = $region5
    $region4: #{tpu_custom_call.1} parent=1 // pred_region
      %17 = vsyncadd [#allocation3], 0
      %s18 = sshll.u32 %s0, 4
      %s19 = int_to_ptr.hbm [resolvable:$true] %s18
      %s20 = sshll.u32 [#allocation2], 4
      %s21 = int_to_ptr.vmem [resolvable:$true] %s20
      %26 = dma.hbm_to_vmem [thread:$0]  %s19, 256, %s21, [#allocation3], 32, 32, 2
    $region5: #{tpu_custom_call.1} parent=1 // pred_fallthru
      _
    // Predicated region
    $region6: #{tpu_custom_call.1} parent=1 // pred_check
      _
    $region7: #{tpu_custom_call.1} parent=1 // pred_check_branch
      %28 = sbr.rel (0) target = $region9
    $region8: #{tpu_custom_call.1} parent=1 // pred_region
      %30 = vsyncadd [#allocation6], 0
      %s31 = sshll.u32 %s1, 4
      %s32 = int_to_ptr.hbm [resolvable:$true] %s31
      %s33 = sshll.u32 [#allocation5], 4
      %s34 = int_to_ptr.vmem [resolvable:$true] %s33
      %39 = dma.hbm_to_vmem [thread:$0]  %s32, 256, %s34, [#allocation6], 64, 64, 4
    $region9: #{tpu_custom_call.1} parent=1 // pred_fallthru
      _
    // Predicated region
    $region10: #{tpu_custom_call.1} parent=1 // pred_check
      _
    $region11: #{tpu_custom_call.1} parent=1 // pred_check_branch
      %41 = sbr.rel (0) target = $region13
    $region12: #{tpu_custom_call.1} parent=1 // pred_region
      %43 = dma.done [#allocation3], 256
    $region13: #{tpu_custom_call.1} parent=1 // pred_fallthru
      _
    // Predicated region
    $region14: #{tpu_custom_call.1} parent=1 // pred_check
      _
    $region15: #{tpu_custom_call.1} parent=1 // pred_check_branch
      %45 = sbr.rel (0) target = $region17
    $region16: #{tpu_custom_call.1} parent=1 // pred_region
      %47 = dma.done [#allocation6], 256
    $region17: #{tpu_custom_call.1} parent=1 // pred_fallthru
      _
    %p49 = scmp.eq.s32.totalorder 0, 0
    // Predicated region
    $region18: #{tpu_custom_call.1} parent=1 // pred_check
      %p50 = pneg %p49
    $region19: #{tpu_custom_call.1} parent=1 // pred_check_branch
      %52 = sbr.rel (%p50) target = $region21
    $region20: #{tpu_custom_call.1} parent=1 // pred_region
      %vm53 = vcmask 254976
      %54 = vst.msk [vmem:[#allocation8] sm:$0x3] %vm53, 0.0
      %55 = vst.msk [vmem:[#allocation10] sm:$0x3] %vm53, 0.0
    $region21: #{tpu_custom_call.1} parent=1 // pred_fallthru
      _
    %v56 = vld [vmem:[#allocation5] sm:$0xf]
    %v57 = vld [vmem:[#allocation5 + $0x4] sm:$0xf]
    %v58 = vld [vmem:[#allocation5 + $0x8] sm:$0xf]
    %v59 = vld [vmem:[#allocation5 + $0xc] sm:$0xf]
    %v60 = vld [vmem:[#allocation8] sm:$0x3]
    %v61 = vld [vmem:[#allocation10] sm:$0x3]
    %v62 = vld [vmem:[#allocation2] sm:$0x3]
    %v63 = vpack.c.bf16 %v60, %v60
    %v68 = vunpack.c.l.b16 %v56
    %v69 = vunpack.c.l.b16 %v57
    %v70 = vunpack.c.l.b16 %v58
    %v71 = vunpack.c.l.b16 %v59
    %v72 = vpack.c.b16 %v69, %v68
    %v73 = vpack.c.b16 %v71, %v70
    %vm76 = vcmask 261120
    %v78 = vsel %vm76, %v63, 0
    %80 = vmatpush.bf16.msra.mxu0 0
    %81 = vmatpush.bf16.msra.mxu0 0
    %82 = vmatpush.bf16.msra.mxu0 0
    %83 = vmatpush.bf16.msra.mxu0 0
    %84 = vmatpush.bf16.msra.mxu0 0
    %85 = vmatpush.bf16.msra.mxu0 0
    %86 = vmatpush.bf16.msra.mxu0 %v73
    %87 = vmatpush.bf16.msra.mxu0 %v72
    %88 = vmatmul.bf16.gmra.mxu0 %v78
    %v89 = vpop.f32.mrf.mxu0
    %v90 = vadd.f32 0.0, %v89
    %v91 = vpop.f32.mrf.mxu0
    %92 = vdwg.mxu0
    %v93 = vadd.f32 %v62, %v90
    %v94 = vxor.u32 %v93, 2147483648
    %v95 = vmul.f32 %v94, 1.442695
    %v96 = vpow.pop %v95
    %v97 = vadd.f32 %v96, 1.0
    %v98 = vrcp.pop %v97
    %v99 = vmul.f32 %v97, %v98
    %v100 = vsub.f32 1.0, %v99
    %v101 = vmul.f32 %v98, %v100
    %v102 = vadd.f32 %v98, %v101
    %vm103 = vweird.f32 %v97
    %vm104 = vweird.f32 %v98
    %vm105 = vmor %vm103, %vm104
    %v106 = vsel %vm105, %v98, %v102
    %v107 = vand.u32 2147483647, %v97
    %vm108 = vcmp.eq.f32.partialorder %v107, 8.507059e+37
    %v109 = vand.u32 %v97, 2147483648
    %v110 = vor.u32 1.1754944e-38, %v109
    %v111 = vsel %vm108, %v110, %v106
    %v112 = vmul.f32 1.0, %v111
    %v113 = vtanh.pop %v93
    %115 = vrot.lane.b32.xlu0 %v61, 32
    %v116 = vpop.permute.xlu0 %115
    %v118 = vmul.f32 %v112, %v116
    %120 = vrot.lane.b32.xlu0 %v113, 64
    %v121 = vpop.permute.xlu0 %120
    %v123 = vmul.f32 %v112, %v121
    %125 = vrot.lane.b32.xlu0 %v123, 32
    %v126 = vpop.permute.xlu0 %125
    %v128 = vadd.f32 %v118, %v126
    %v129 = vtanh.pop %v128
    %131 = vrot.lane.b32.xlu0 %v129, 64
    %v132 = vpop.permute.xlu0 %131
    %v134 = vmul.f32 %v112, %v132
    %136 = vrot.lane.b32.xlu0 %v134, 32
    %v137 = vpop.permute.xlu0 %136
    %vm139 = vcmask 254976
    %140 = vst.msk [vmem:[#allocation7] sm:$0x3] %vm139, %v137
    %s141 = scalar_lea.vmem [#allocation2], 2
    %v142 = vld [vmem:[%s141] sm:$0x3]
    %v143 = vpack.c.bf16 %v134, %v134
    %145 = vrot.lane.b32.xlu0 %v143, 32
    %v146 = vpop.permute.xlu0 %145
    %v148 = vsel %vm76, %v146, 0
    %150 = vmatpush.bf16.msra.mxu0 0
    %151 = vmatpush.bf16.msra.mxu0 0
    %152 = vmatpush.bf16.msra.mxu0 0
    %153 = vmatpush.bf16.msra.mxu0 0
    %154 = vmatpush.bf16.msra.mxu0 0
    %155 = vmatpush.bf16.msra.mxu0 0
    %156 = vmatpush.bf16.msra.mxu0 %v73
    %157 = vmatpush.bf16.msra.mxu0 %v72
    %158 = vmatmul.bf16.gmra.mxu0 %v148
    %v159 = vpop.f32.mrf.mxu0
    %v160 = vadd.f32 0.0, %v159
    %v161 = vpop.f32.mrf.mxu0
    %162 = vdwg.mxu0
    %v163 = vadd.f32 %v142, %v160
    %v164 = vxor.u32 %v163, 2147483648
    %v165 = vmul.f32 %v164, 1.442695
    %v166 = vpow.pop %v165
    %v167 = vadd.f32 %v166, 1.0
    %v168 = vrcp.pop %v167
    %v169 = vmul.f32 %v167, %v168
    %v170 = vsub.f32 1.0, %v169
    %v171 = vmul.f32 %v168, %v170
    %v172 = vadd.f32 %v168, %v171
    %vm173 = vweird.f32 %v167
    %vm174 = vweird.f32 %v168
    %vm175 = vmor %vm173, %vm174
    %v176 = vsel %vm175, %v168, %v172
    %v177 = vand.u32 2147483647, %v167
    %vm178 = vcmp.eq.f32.partialorder %v177, 8.507059e+37
    %v179 = vand.u32 %v167, 2147483648
    %v180 = vor.u32 1.1754944e-38, %v179
    %v181 = vsel %vm178, %v180, %v176
    %v182 = vmul.f32 1.0, %v181
    %v183 = vtanh.pop %v163
    %v184 = vmul.f32 %v182, %v128
    %186 = vrot.lane.b32.xlu0 %v183, 64
    %v187 = vpop.permute.xlu0 %186
    %v189 = vmul.f32 %v182, %v187
    %191 = vrot.lane.b32.xlu0 %v189, 32
    %v192 = vpop.permute.xlu0 %191
    %v194 = vadd.f32 %v184, %v192
    %v195 = vtanh.pop %v194
    %197 = vrot.lane.b32.xlu0 %v195, 64
    %v198 = vpop.permute.xlu0 %197
    %v200 = vmul.f32 %v182, %v198
    %202 = vrot.lane.b32.xlu0 %v200, 32
    %v203 = vpop.permute.xlu0 %202
    %s205 = scalar_lea.vmem [#allocation7], 2
    %206 = vst.msk [vmem:[%s205] sm:$0x3] %vm139, %v203
    %s207 = scalar_lea.vmem [#allocation2], 4
    %v208 = vld [vmem:[%s207] sm:$0x3]
    %v209 = vpack.c.bf16 %v200, %v200
    %211 = vrot.lane.b32.xlu0 %v209, 32
    %v212 = vpop.permute.xlu0 %211
    %v214 = vsel %vm76, %v212, 0
    %216 = vmatpush.bf16.msra.mxu0 0
    %217 = vmatpush.bf16.msra.mxu0 0
    %218 = vmatpush.bf16.msra.mxu0 0
    %219 = vmatpush.bf16.msra.mxu0 0
    %220 = vmatpush.bf16.msra.mxu0 0
    %221 = vmatpush.bf16.msra.mxu0 0
    %222 = vmatpush.bf16.msra.mxu0 %v73
    %223 = vmatpush.bf16.msra.mxu0 %v72
    %224 = vmatmul.bf16.gmra.mxu0 %v214
    %v225 = vpop.f32.mrf.mxu0
    %v226 = vadd.f32 0.0, %v225
    %v227 = vpop.f32.mrf.mxu0
    %228 = vdwg.mxu0
    %v229 = vadd.f32 %v208, %v226
    %v230 = vxor.u32 %v229, 2147483648
    %v231 = vmul.f32 %v230, 1.442695
    %v232 = vpow.pop %v231
    %v233 = vadd.f32 %v232, 1.0
    %v234 = vrcp.pop %v233
    %v235 = vmul.f32 %v233, %v234
    %v236 = vsub.f32 1.0, %v235
    %v237 = vmul.f32 %v234, %v236
    %v238 = vadd.f32 %v234, %v237
    %vm239 = vweird.f32 %v233
    %vm240 = vweird.f32 %v234
    %vm241 = vmor %vm239, %vm240
    %v242 = vsel %vm241, %v234, %v238
    %v243 = vand.u32 2147483647, %v233
    %vm244 = vcmp.eq.f32.partialorder %v243, 8.507059e+37
    %v245 = vand.u32 %v233, 2147483648
    %v246 = vor.u32 1.1754944e-38, %v245
    %v247 = vsel %vm244, %v246, %v242
    %v248 = vmul.f32 1.0, %v247
    %v249 = vtanh.pop %v229
    %v250 = vmul.f32 %v248, %v194
    %252 = vrot.lane.b32.xlu0 %v249, 64
    %v253 = vpop.permute.xlu0 %252
    %v255 = vmul.f32 %v248, %v253
    %257 = vrot.lane.b32.xlu0 %v255, 32
    %v258 = vpop.permute.xlu0 %257
    %v260 = vadd.f32 %v250, %v258
    %v261 = vtanh.pop %v260
    %263 = vrot.lane.b32.xlu0 %v261, 64
    %v264 = vpop.permute.xlu0 %263
    %v266 = vmul.f32 %v248, %v264
    %268 = vrot.lane.b32.xlu0 %v266, 32
    %v269 = vpop.permute.xlu0 %268
    %s271 = scalar_lea.vmem [#allocation7], 4
    %272 = vst.msk [vmem:[%s271] sm:$0x3] %vm139, %v269
    %s273 = scalar_lea.vmem [#allocation2], 6
    %v274 = vld [vmem:[%s273] sm:$0x3]
    %v275 = vpack.c.bf16 %v266, %v266
    %277 = vrot.lane.b32.xlu0 %v275, 32
    %v278 = vpop.permute.xlu0 %277
    %v280 = vsel %vm76, %v278, 0
    %282 = vmatpush.bf16.msra.mxu0 0
    %283 = vmatpush.bf16.msra.mxu0 0
    %284 = vmatpush.bf16.msra.mxu0 0
    %285 = vmatpush.bf16.msra.mxu0 0
    %286 = vmatpush.bf16.msra.mxu0 0
    %287 = vmatpush.bf16.msra.mxu0 0
    %288 = vmatpush.bf16.msra.mxu0 %v73
    %289 = vmatpush.bf16.msra.mxu0 %v72
    %290 = vmatmul.bf16.gmra.mxu0 %v280
    %v291 = vpop.f32.mrf.mxu0
    %v292 = vadd.f32 0.0, %v291
    %v293 = vpop.f32.mrf.mxu0
    %294 = vdwg.mxu0
    %v295 = vadd.f32 %v274, %v292
    %v296 = vxor.u32 %v295, 2147483648
    %v297 = vmul.f32 %v296, 1.442695
    %v298 = vpow.pop %v297
    %v299 = vadd.f32 %v298, 1.0
    %v300 = vrcp.pop %v299
    %v301 = vmul.f32 %v299, %v300
    %v302 = vsub.f32 1.0, %v301
    %v303 = vmul.f32 %v300, %v302
    %v304 = vadd.f32 %v300, %v303
    %vm305 = vweird.f32 %v299
    %vm306 = vweird.f32 %v300
    %vm307 = vmor %vm305, %vm306
    %v308 = vsel %vm307, %v300, %v304
    %v309 = vand.u32 2147483647, %v299
    %vm310 = vcmp.eq.f32.partialorder %v309, 8.507059e+37
    %v311 = vand.u32 %v299, 2147483648
    %v312 = vor.u32 1.1754944e-38, %v311
    %v313 = vsel %vm310, %v312, %v308
    %v314 = vmul.f32 1.0, %v313
    %v315 = vtanh.pop %v295
    %v316 = vmul.f32 %v314, %v260
    %318 = vrot.lane.b32.xlu0 %v315, 64
    %v319 = vpop.permute.xlu0 %318
    %v321 = vmul.f32 %v314, %v319
    %323 = vrot.lane.b32.xlu0 %v321, 32
    %v324 = vpop.permute.xlu0 %323
    %v326 = vadd.f32 %v316, %v324
    %v327 = vtanh.pop %v326
    %329 = vrot.lane.b32.xlu0 %v327, 64
    %v330 = vpop.permute.xlu0 %329
    %v332 = vmul.f32 %v314, %v330
    %334 = vrot.lane.b32.xlu0 %v332, 32
    %v335 = vpop.permute.xlu0 %334
    %s337 = scalar_lea.vmem [#allocation7], 6
    %338 = vst.msk [vmem:[%s337] sm:$0x3] %vm139, %v335
    %s339 = scalar_lea.vmem [#allocation2], 8
    %v340 = vld [vmem:[%s339] sm:$0x3]
    %v341 = vpack.c.bf16 %v332, %v332
    %343 = vrot.lane.b32.xlu0 %v341, 32
    %v344 = vpop.permute.xlu0 %343
    %v346 = vsel %vm76, %v344, 0
    %348 = vmatpush.bf16.msra.mxu0 0
    %349 = vmatpush.bf16.msra.mxu0 0
    %350 = vmatpush.bf16.msra.mxu0 0
    %351 = vmatpush.bf16.msra.mxu0 0
    %352 = vmatpush.bf16.msra.mxu0 0
    %353 = vmatpush.bf16.msra.mxu0 0
    %354 = vmatpush.bf16.msra.mxu0 %v73
    %355 = vmatpush.bf16.msra.mxu0 %v72
    %356 = vmatmul.bf16.gmra.mxu0 %v346
    %v357 = vpop.f32.mrf.mxu0
    %v358 = vadd.f32 0.0, %v357
    %v359 = vpop.f32.mrf.mxu0
    %360 = vdwg.mxu0
    %v361 = vadd.f32 %v340, %v358
    %v362 = vxor.u32 %v361, 2147483648
    %v363 = vmul.f32 %v362, 1.442695
    %v364 = vpow.pop %v363
    %v365 = vadd.f32 %v364, 1.0
    %v366 = vrcp.pop %v365
    %v367 = vmul.f32 %v365, %v366
    %v368 = vsub.f32 1.0, %v367
    %v369 = vmul.f32 %v366, %v368
    %v370 = vadd.f32 %v366, %v369
    %vm371 = vweird.f32 %v365
    %vm372 = vweird.f32 %v366
    %vm373 = vmor %vm371, %vm372
    %v374 = vsel %vm373, %v366, %v370
    %v375 = vand.u32 2147483647, %v365
    %vm376 = vcmp.eq.f32.partialorder %v375, 8.507059e+37
    %v377 = vand.u32 %v365, 2147483648
    %v378 = vor.u32 1.1754944e-38, %v377
    %v379 = vsel %vm376, %v378, %v374
    %v380 = vmul.f32 1.0, %v379
    %v381 = vtanh.pop %v361
    %v382 = vmul.f32 %v380, %v326
    %384 = vrot.lane.b32.xlu0 %v381, 64
    %v385 = vpop.permute.xlu0 %384
    %v387 = vmul.f32 %v380, %v385
    %389 = vrot.lane.b32.xlu0 %v387, 32
    %v390 = vpop.permute.xlu0 %389
    %v392 = vadd.f32 %v382, %v390
    %v393 = vtanh.pop %v392
    %395 = vrot.lane.b32.xlu0 %v393, 64
    %v396 = vpop.permute.xlu0 %395
    %v398 = vmul.f32 %v380, %v396
    %400 = vrot.lane.b32.xlu0 %v398, 32
    %v401 = vpop.permute.xlu0 %400
    %s403 = scalar_lea.vmem [#allocation7], 8
    %404 = vst.msk [vmem:[%s403] sm:$0x3] %vm139, %v401
    %s405 = scalar_lea.vmem [#allocation2], 10
    %v406 = vld [vmem:[%s405] sm:$0x3]
    %v407 = vpack.c.bf16 %v398, %v398
    %409 = vrot.lane.b32.xlu0 %v407, 32
    %v410 = vpop.permute.xlu0 %409
    %v412 = vsel %vm76, %v410, 0
    %414 = vmatpush.bf16.msra.mxu0 0
    %415 = vmatpush.bf16.msra.mxu0 0
    %416 = vmatpush.bf16.msra.mxu0 0
    %417 = vmatpush.bf16.msra.mxu0 0
    %418 = vmatpush.bf16.msra.mxu0 0
    %419 = vmatpush.bf16.msra.mxu0 0
    %420 = vmatpush.bf16.msra.mxu0 %v73
    %421 = vmatpush.bf16.msra.mxu0 %v72
    %422 = vmatmul.bf16.gmra.mxu0 %v412
    %v423 = vpop.f32.mrf.mxu0
    %v424 = vadd.f32 0.0, %v423
    %v425 = vpop.f32.mrf.mxu0
    %426 = vdwg.mxu0
    %v427 = vadd.f32 %v406, %v424
    %v428 = vxor.u32 %v427, 2147483648
    %v429 = vmul.f32 %v428, 1.442695
    %v430 = vpow.pop %v429
    %v431 = vadd.f32 %v430, 1.0
    %v432 = vrcp.pop %v431
    %v433 = vmul.f32 %v431, %v432
    %v434 = vsub.f32 1.0, %v433
    %v435 = vmul.f32 %v432, %v434
    %v436 = vadd.f32 %v432, %v435
    %vm437 = vweird.f32 %v431
    %vm438 = vweird.f32 %v432
    %vm439 = vmor %vm437, %vm438
    %v440 = vsel %vm439, %v432, %v436
    %v441 = vand.u32 2147483647, %v431
    %vm442 = vcmp.eq.f32.partialorder %v441, 8.507059e+37
    %v443 = vand.u32 %v431, 2147483648
    %v444 = vor.u32 1.1754944e-38, %v443
    %v445 = vsel %vm442, %v444, %v440
    %v446 = vmul.f32 1.0, %v445
    %v447 = vtanh.pop %v427
    %v448 = vmul.f32 %v446, %v392
    %450 = vrot.lane.b32.xlu0 %v447, 64
    %v451 = vpop.permute.xlu0 %450
    %v453 = vmul.f32 %v446, %v451
    %455 = vrot.lane.b32.xlu0 %v453, 32
    %v456 = vpop.permute.xlu0 %455
    %v458 = vadd.f32 %v448, %v456
    %v459 = vtanh.pop %v458
    %461 = vrot.lane.b32.xlu0 %v459, 64
    %v462 = vpop.permute.xlu0 %461
    %v464 = vmul.f32 %v446, %v462
    %466 = vrot.lane.b32.xlu0 %v464, 32
    %v467 = vpop.permute.xlu0 %466
    %s469 = scalar_lea.vmem [#allocation7], 10
    %470 = vst.msk [vmem:[%s469] sm:$0x3] %vm139, %v467
    %s471 = scalar_lea.vmem [#allocation2], 12
    %v472 = vld [vmem:[%s471] sm:$0x3]
    %v473 = vpack.c.bf16 %v464, %v464
    %475 = vrot.lane.b32.xlu0 %v473, 32
    %v476 = vpop.permute.xlu0 %475
    %v478 = vsel %vm76, %v476, 0
    %480 = vmatpush.bf16.msra.mxu0 0
    %481 = vmatpush.bf16.msra.mxu0 0
    %482 = vmatpush.bf16.msra.mxu0 0
    %483 = vmatpush.bf16.msra.mxu0 0
    %484 = vmatpush.bf16.msra.mxu0 0
    %485 = vmatpush.bf16.msra.mxu0 0
    %486 = vmatpush.bf16.msra.mxu0 %v73
    %487 = vmatpush.bf16.msra.mxu0 %v72
    %488 = vmatmul.bf16.gmra.mxu0 %v478
    %v489 = vpop.f32.mrf.mxu0
    %v490 = vadd.f32 0.0, %v489
    %v491 = vpop.f32.mrf.mxu0
    %492 = vdwg.mxu0
    %v493 = vadd.f32 %v472, %v490
    %v494 = vxor.u32 %v493, 2147483648
    %v495 = vmul.f32 %v494, 1.442695
    %v496 = vpow.pop %v495
    %v497 = vadd.f32 %v496, 1.0
    %v498 = vrcp.pop %v497
    %v499 = vmul.f32 %v497, %v498
    %v500 = vsub.f32 1.0, %v499
    %v501 = vmul.f32 %v498, %v500
    %v502 = vadd.f32 %v498, %v501
    %vm503 = vweird.f32 %v497
    %vm504 = vweird.f32 %v498
    %vm505 = vmor %vm503, %vm504
    %v506 = vsel %vm505, %v498, %v502
    %v507 = vand.u32 2147483647, %v497
    %vm508 = vcmp.eq.f32.partialorder %v507, 8.507059e+37
    %v509 = vand.u32 %v497, 2147483648
    %v510 = vor.u32 1.1754944e-38, %v509
    %v511 = vsel %vm508, %v510, %v506
    %v512 = vmul.f32 1.0, %v511
    %v513 = vtanh.pop %v493
    %v514 = vmul.f32 %v512, %v458
    %516 = vrot.lane.b32.xlu0 %v513, 64
    %v517 = vpop.permute.xlu0 %516
    %v519 = vmul.f32 %v512, %v517
    %521 = vrot.lane.b32.xlu0 %v519, 32
    %v522 = vpop.permute.xlu0 %521
    %v524 = vadd.f32 %v514, %v522
    %v525 = vtanh.pop %v524
    %527 = vrot.lane.b32.xlu0 %v525, 64
    %v528 = vpop.permute.xlu0 %527
    %v530 = vmul.f32 %v512, %v528
    %532 = vrot.lane.b32.xlu0 %v530, 32
    %v533 = vpop.permute.xlu0 %532
    %s535 = scalar_lea.vmem [#allocation7], 12
    %536 = vst.msk [vmem:[%s535] sm:$0x3] %vm139, %v533
    %s537 = scalar_lea.vmem [#allocation2], 14
    %v538 = vld [vmem:[%s537] sm:$0x3]
    %v539 = vpack.c.bf16 %v530, %v530
    %541 = vrot.lane.b32.xlu0 %v539, 32
    %v542 = vpop.permute.xlu0 %541
    %v544 = vsel %vm76, %v542, 0
    %546 = vmatpush.bf16.msra.mxu0 0
    %547 = vmatpush.bf16.msra.mxu0 0
    %548 = vmatpush.bf16.msra.mxu0 0
    %549 = vmatpush.bf16.msra.mxu0 0
    %550 = vmatpush.bf16.msra.mxu0 0
    %551 = vmatpush.bf16.msra.mxu0 0
    %552 = vmatpush.bf16.msra.mxu0 %v73
    %553 = vmatpush.bf16.msra.mxu0 %v72
    %554 = vmatmul.bf16.gmra.mxu0 %v544
    %v555 = vpop.f32.mrf.mxu0
    %v556 = vadd.f32 0.0, %v555
    %v557 = vpop.f32.mrf.mxu0
    %558 = vdwg.mxu0
    %v559 = vadd.f32 %v538, %v556
    %v560 = vxor.u32 %v559, 2147483648
    %v561 = vmul.f32 %v560, 1.442695
    %v562 = vpow.pop %v561
    %v563 = vadd.f32 %v562, 1.0
    %v564 = vrcp.pop %v563
    %v565 = vmul.f32 %v563, %v564
    %v566 = vsub.f32 1.0, %v565
    %v567 = vmul.f32 %v564, %v566
    %v568 = vadd.f32 %v564, %v567
    %vm569 = vweird.f32 %v563
    %vm570 = vweird.f32 %v564
    %vm571 = vmor %vm569, %vm570
    %v572 = vsel %vm571, %v564, %v568
    %v573 = vand.u32 2147483647, %v563
    %vm574 = vcmp.eq.f32.partialorder %v573, 8.507059e+37
    %v575 = vand.u32 %v563, 2147483648
    %v576 = vor.u32 1.1754944e-38, %v575
    %v577 = vsel %vm574, %v576, %v572
    %v578 = vmul.f32 1.0, %v577
    %v579 = vtanh.pop %v559
    %v580 = vmul.f32 %v578, %v524
    %582 = vrot.lane.b32.xlu0 %v579, 64
    %v583 = vpop.permute.xlu0 %582
    %v585 = vmul.f32 %v578, %v583
    %587 = vrot.lane.b32.xlu0 %v585, 32
    %v588 = vpop.permute.xlu0 %587
    %v590 = vadd.f32 %v580, %v588
    %v591 = vtanh.pop %v590
    %593 = vrot.lane.b32.xlu0 %v591, 64
    %v594 = vpop.permute.xlu0 %593
    %v596 = vmul.f32 %v578, %v594
    %598 = vrot.lane.b32.xlu0 %v596, 32
    %v599 = vpop.permute.xlu0 %598
    %s601 = scalar_lea.vmem [#allocation7], 14
    %602 = vst.msk [vmem:[%s601] sm:$0x3] %vm139, %v599
    %603 = vst.msk [vmem:[#allocation8] sm:$0x3] %vm139, %v599
    %605 = vrot.lane.b32.xlu0 %v590, 96
    %v606 = vpop.permute.xlu0 %605
    %608 = vst.msk [vmem:[#allocation10] sm:$0x3] %vm139, %v606
    // Predicated region
    $region22: #{tpu_custom_call.1} parent=1 // pred_check
      _
    $region23: #{tpu_custom_call.1} parent=1 // pred_check_branch
      %610 = sbr.rel (0) target = $region25
    $region24: #{tpu_custom_call.1} parent=1 // pred_region
      %612 = vsyncadd [#allocation4], 0
      %s613 = sshll.u32 [#allocation7], 4
      %s614 = int_to_ptr.vmem [resolvable:$true] %s613
      %s615 = sshll.u32 %s2, 4
      %s616 = int_to_ptr.hbm [resolvable:$true] %s615
      %621 = dma.vmem_to_hbm [thread:$0]  %s614, 256, %s616, [#allocation4], 32, 32, 2
    $region25: #{tpu_custom_call.1} parent=1 // pred_fallthru
      _
    // Predicated region
    $region26: #{tpu_custom_call.1} parent=1 // pred_check
      _
    $region27: #{tpu_custom_call.1} parent=1 // pred_check_branch
      %623 = sbr.rel (0) target = $region29
    $region28: #{tpu_custom_call.1} parent=1 // pred_region
      %625 = vsyncadd [#allocation9], 0
      %s627 = sshll.u32 [#allocation8], 4
      %s628 = int_to_ptr.vmem [resolvable:$true] %s627
      %s629 = sshll.u32 %s3, 4
      %s630 = int_to_ptr.hbm [resolvable:$true] %s629
      %632 = dma.vmem_to_hbm [thread:$0]  %s628, 32, %s630, [#allocation9]
    $region29: #{tpu_custom_call.1} parent=1 // pred_fallthru
      _
    // Predicated region
    $region30: #{tpu_custom_call.1} parent=1 // pred_check
      _
    $region31: #{tpu_custom_call.1} parent=1 // pred_check_branch
      %634 = sbr.rel (0) target = $region33
    $region32: #{tpu_custom_call.1} parent=1 // pred_region
      %636 = vsyncadd [#allocation9], 0
      %s638 = sshll.u32 [#allocation10], 4
      %s639 = int_to_ptr.vmem [resolvable:$true] %s638
      %s640 = sshll.u32 %s4, 4
      %s641 = int_to_ptr.hbm [resolvable:$true] %s640
      %643 = dma.vmem_to_hbm [thread:$0]  %s639, 32, %s641, [#allocation9]
    $region33: #{tpu_custom_call.1} parent=1 // pred_fallthru
      _
    // Predicated region
    $region34: #{tpu_custom_call.1} parent=1 // pred_check
      _
    $region35: #{tpu_custom_call.1} parent=1 // pred_check_branch
      %645 = sbr.rel (0) target = $region37
    $region36: #{tpu_custom_call.1} parent=1 // pred_region
      %647 = dma.done [#allocation4], 256
    $region37: #{tpu_custom_call.1} parent=1 // pred_fallthru
      _
    // Predicated region
    $region38: #{tpu_custom_call.1} parent=1 // pred_check
      _
    $region39: #{tpu_custom_call.1} parent=1 // pred_check_branch
      %649 = sbr.rel (0) target = $region41
    $region40: #{tpu_custom_call.1} parent=1 // pred_region
      %651 = dma.done [#allocation9], 32
    $region41: #{tpu_custom_call.1} parent=1 // pred_fallthru
      _
    // Predicated region
    $region42: #{tpu_custom_call.1} parent=1 // pred_check
      _
    $region43: #{tpu_custom_call.1} parent=1 // pred_check_branch
      %653 = sbr.rel (0) target = $region45
    $region44: #{tpu_custom_call.1} parent=1 // pred_region
      %655 = dma.done [#allocation9], 32
    $region45: #{tpu_custom_call.1} parent=1 // pred_fallthru
      _
    %656 = vsyncpa [#allocation3], 1
    %657 = vsyncpa [#allocation6], 1
    %658 = vsyncpa [#allocation4], 1
    %659 = vsyncpa [#allocation9], 1

</llo_original>
